<compile_context>
chip_gen: v6e
topology: v6e:2x2x1
jax: 0.10.0
libtpu: 0.0.40
codegen_flags: <defaults>
</compile_context>

<pallas_src>
import functools

import jax
import jax.numpy as jnp
from jax.experimental import pallas as pl
from jax.experimental.pallas import tpu as pltpu

LANE = 128     # last-dim tile (all TPU generations)
SUBLANE = 8    # second-to-last dim tile for f32


def _round_up(n, m):
    return -(-n // m) * m


def _mlp_kernel(x_ref, b_ref, *rest, num_layers):
    """Fused MLP body for one batch tile.

    x_ref : (TILE_B, in_pad)            f32
    b_ref : (num_layers, max_out_pad)   f32   (packed, zero-padded biases)
    rest  : (w0_ref, ..., w{L-1}_ref, o_ref)
      wi_ref: (in_pad_i, out_pad_i)     bf16/f32 (zero-padded, pre-transposed)
      o_ref : (TILE_B, out_pad_last)    f32
    Intermediate activations stay in vregs / compiler-managed VMEM.
    """
    w_refs = rest[:num_layers]
    o_ref = rest[num_layers]

    y = x_ref[...]                                            # f32
    for i in range(num_layers):
        w = w_refs[i][...]                                    # (ip, op) mxu dtype
        op = w.shape[1]
        b = b_ref[i:i + 1, :op]                               # (1, op) f32, static slice
        y = jnp.dot(y.astype(w.dtype), w,
                    preferred_element_type=jnp.float32)       # MXU, f32 accumulate
        y = jnp.tanh(y + b)                                   # VPU + EUP, f32
        # eval-mode Dropout(0.5) == identity
    o_ref[...] = y.astype(o_ref.dtype)


class FullyConnectedNetPallas:
    """Eval-mode FullyConnectedNet as a single fused Pallas kernel.

    Parameters are padded (feature dims -> multiples of 128) and cast to the
    MXU dtype ONCE at construction time; the jitted forward only touches x.
    """

    def __init__(self, params, mxu_dtype=jnp.bfloat16):
        padded_w = []
        out_pads = []
        for w_t, b in params:                 # w_t: (in, out), b: (out,) or (1, out)
            i, o = w_t.shape
            ip, op = _round_up(i, LANE), _round_up(o, LANE)
            wp = jnp.zeros((ip, op), mxu_dtype).at[:i, :o].set(w_t.astype(mxu_dtype))
            padded_w.append(wp)
            out_pads.append(op)

        max_op = max(out_pads)
        b_packed = jnp.zeros((len(params), max_op), jnp.float32)
        for li, (_, b) in enumerate(params):
            bv = jnp.asarray(b, jnp.float32).reshape(-1)
            b_packed = b_packed.at[li, :bv.shape[0]].set(bv)

        self.weights = tuple(padded_w)
        self.b_packed = b_packed
        self.in_features = params[0][0].shape[0]
        self.out_features = params[-1][0].shape[1]
        self._forward = jax.jit(self._forward_impl)

    def __call__(self, x):
        return self._forward(x, self.weights, self.b_packed)

    def _forward_impl(self, x, weights, b_packed):
        B, in_features = x.shape
        num_layers = len(weights)
        in_pad = weights[0].shape[0]
        out_pad = weights[-1].shape[1]

        # Batch tile: MXU-width (256) tiles when the batch is large enough,
        # otherwise one tile rounded up to the f32 sublane multiple.
        tile_b = 256 if B >= 256 else _round_up(B, SUBLANE)
        b_pad = _round_up(B, tile_b)

        if (b_pad, in_pad) != (B, in_features):
            x_in = jnp.pad(x, ((0, b_pad - B), (0, in_pad - in_features)))
        else:
            x_in = x

        grid = (b_pad // tile_b,)

        # Explicit VMEM budget (v7x: 64 MiB physical, 32 MiB scoped default).
        w_bytes = sum(w.size * w.dtype.itemsize for w in weights)
        b_bytes = b_packed.size * b_packed.dtype.itemsize
        io_bytes = 2 * (tile_b * in_pad + tile_b * out_pad) * x.dtype.itemsize  # dbl-buffered
        act_bytes = 2 * tile_b * max(w.shape[1] for w in weights) * 4
        vmem_budget = int(1.5 * (w_bytes + b_bytes + io_bytes + act_bytes)) + (4 << 20)
        vmem_budget = min(max(vmem_budget, 32 << 20), 100 << 20)

        in_specs = [
            pl.BlockSpec((tile_b, in_pad), lambda i: (i, 0)),          # x: batch-tiled
            pl.BlockSpec(b_packed.shape, lambda i: (0, 0)),            # packed biases: resident
        ] + [
            pl.BlockSpec(w.shape, lambda i: (0, 0)) for w in weights   # weights: resident
        ]

        y_pad = pl.pallas_call(
            functools.partial(_mlp_kernel, num_layers=num_layers),
            out_shape=jax.ShapeDtypeStruct((b_pad, out_pad), x.dtype),
            grid=grid,
            in_specs=in_specs,
            out_specs=pl.BlockSpec((tile_b, out_pad), lambda i: (i, 0)),
            compiler_params=pltpu.CompilerParams(
                dimension_semantics=("parallel",),
                vmem_limit_bytes=vmem_budget,
            ),
        )(x_in, b_packed, *weights)

        if b_pad == B and out_pad == self.out_features:
            return y_pad                       # already lane-dense & exact shape
        return y_pad[:B, :self.out_features]


def init_params(key, layer_sizes):
    """Parameter init matching the PyTorch module's shapes.

    Linear weights: Xavier-normal (as in init_weights); biases: PyTorch default
    U(-1/sqrt(fan_in), 1/sqrt(fan_in)).  Weights stored pre-transposed (in, out).
    """
    params = []
    for in_size, out_size in zip(layer_sizes[:-1], layer_sizes[1:]):
        key, kw, kb = jax.random.split(key, 3)
        std = (2.0 / (in_size + out_size)) ** 0.5  # xavier_normal gain=1
        w_t = std * jax.random.normal(kw, (in_size, out_size), dtype=jnp.float32)
        bound = 1.0 / (in_size ** 0.5)
        b = jax.random.uniform(
            kb, (1, out_size), minval=-bound, maxval=bound, dtype=jnp.float32
        )
        params.append((w_t, b))
    return params


def fully_connected_net_ref(x, params):
    """Pure-JAX f32 reference for correctness checking."""
    for w_t, b in params:
        x = jnp.tanh(x @ w_t + b.reshape(1, -1))
    return x


if __name__ == "__main__":
    key = jax.random.PRNGKey(0)
    layer_sizes = [32, 64, 48, 16]   # layer_sizes argument of FullyConnectedNet
    batch_size = 8

    kx, kp = jax.random.split(key)
    x = jax.random.normal(kx, (batch_size, layer_sizes[0]), dtype=jnp.float32)
    params = init_params(kp, layer_sizes)

    y_ref = fully_connected_net_ref(x, params)

    # f32-MXU path: exact numeric check.
    net_f32 = FullyConnectedNetPallas(params, mxu_dtype=jnp.float32)
    y_f32 = jax.block_until_ready(net_f32(x))
    assert y_f32.shape == (batch_size, layer_sizes[-1])
    assert jnp.allclose(y_f32, y_ref, atol=1e-5, rtol=1e-5)

    # bf16-MXU path (default / perf path on v6e+): loose tolerance.
    net_bf16 = FullyConnectedNetPallas(params)  # mxu_dtype=bf16
    y_bf16 = jax.block_until_ready(net_bf16(x))
    assert y_bf16.shape == (batch_size, layer_sizes[-1])
    assert jnp.allclose(y_bf16, y_ref, atol=3e-2, rtol=3e-2)

    print("KERNEL_OK")
</pallas_src>

<mosaic_0001>
module attributes {stable_mosaic.version = 11 : i64} {
  func.func @_mlp_kernel(%arg0: i32, %arg1: memref<8x128xf32, #tpu.memory_space<vmem>>, %arg2: memref<3x128xf32, #tpu.memory_space<vmem>>, %arg3: memref<128x128xf32, #tpu.memory_space<vmem>>, %arg4: memref<128x128xf32, #tpu.memory_space<vmem>>, %arg5: memref<128x128xf32, #tpu.memory_space<vmem>>, %arg6: memref<8x128xf32, #tpu.memory_space<vmem>>) attributes {dimension_semantics = [#tpu.dimension_semantics<parallel>], iteration_bounds = array<i64: 1>, scalar_prefetch = 0 : i64, scratch_operands = 0 : i64, tpu.core_type = #tpu.core_type<tc>, window_params = [{transform_indices = @transform_0, window_bounds = array<i64: 8, 128>}, {pipeline_mode = #tpu.pipeline_mode<synchronous>, transform_indices = @transform_1, window_bounds = array<i64: 3, 128>}, {pipeline_mode = #tpu.pipeline_mode<synchronous>, transform_indices = @transform_2, window_bounds = array<i64: 128, 128>}, {pipeline_mode = #tpu.pipeline_mode<synchronous>, transform_indices = @transform_3, window_bounds = array<i64: 128, 128>}, {pipeline_mode = #tpu.pipeline_mode<synchronous>, transform_indices = @transform_4, window_bounds = array<i64: 128, 128>}, {transform_indices = @transform_5, window_bounds = array<i64: 8, 128>}]} {
    %c0 = arith.constant 0 : index
    %c0_0 = arith.constant 0 : index
    %0 = vector.load %arg1[%c0, %c0_0] : memref<8x128xf32, #tpu.memory_space<vmem>>, vector<8x128xf32>
    %c0_1 = arith.constant 0 : index
    %c0_2 = arith.constant 0 : index
    %1 = vector.load %arg3[%c0_1, %c0_2] : memref<128x128xf32, #tpu.memory_space<vmem>>, vector<128x128xf32>
    %c0_3 = arith.constant 0 : index
    %c0_4 = arith.constant 0 : index
    %2 = vector.load %arg2[%c0_3, %c0_4] : memref<3x128xf32, #tpu.memory_space<vmem>>, vector<1x128xf32>
    %cst = arith.constant dense<0.000000e+00> : vector<8x128xf32>
    %3 = tpu.matmul %0, %1, %cst {dimension_numbers = #tpu.dot_dimension_numbers<[1], [0], [0], [1], [0, 0, 1, 1], [], []>} : vector<8x128xf32>, vector<128x128xf32>, vector<8x128xf32> -> vector<8x128xf32>
    %4 = vector.broadcast %2 : vector<1x128xf32> to vector<8x128xf32>
    %5 = arith.addf %3, %4 : vector<8x128xf32>
    %6 = math.tanh %5 : vector<8x128xf32>
    %c0_5 = arith.constant 0 : index
    %c0_6 = arith.constant 0 : index
    %7 = vector.load %arg4[%c0_5, %c0_6] : memref<128x128xf32, #tpu.memory_space<vmem>>, vector<128x128xf32>
    %c1 = arith.constant 1 : index
    %c0_7 = arith.constant 0 : index
    %8 = vector.load %arg2[%c1, %c0_7] : memref<3x128xf32, #tpu.memory_space<vmem>>, vector<1x128xf32>
    %cst_8 = arith.constant dense<0.000000e+00> : vector<8x128xf32>
    %9 = tpu.matmul %6, %7, %cst_8 {dimension_numbers = #tpu.dot_dimension_numbers<[1], [0], [0], [1], [0, 0, 1, 1], [], []>} : vector<8x128xf32>, vector<128x128xf32>, vector<8x128xf32> -> vector<8x128xf32>
    %10 = vector.broadcast %8 : vector<1x128xf32> to vector<8x128xf32>
    %11 = arith.addf %9, %10 : vector<8x128xf32>
    %12 = math.tanh %11 : vector<8x128xf32>
    %c0_9 = arith.constant 0 : index
    %c0_10 = arith.constant 0 : index
    %13 = vector.load %arg5[%c0_9, %c0_10] : memref<128x128xf32, #tpu.memory_space<vmem>>, vector<128x128xf32>
    %c2 = arith.constant 2 : index
    %c0_11 = arith.constant 0 : index
    %14 = vector.load %arg2[%c2, %c0_11] : memref<3x128xf32, #tpu.memory_space<vmem>>, vector<1x128xf32>
    %cst_12 = arith.constant dense<0.000000e+00> : vector<8x128xf32>
    %15 = tpu.matmul %12, %13, %cst_12 {dimension_numbers = #tpu.dot_dimension_numbers<[1], [0], [0], [1], [0, 0, 1, 1], [], []>} : vector<8x128xf32>, vector<128x128xf32>, vector<8x128xf32> -> vector<8x128xf32>
    %16 = vector.broadcast %14 : vector<1x128xf32> to vector<8x128xf32>
    %17 = arith.addf %15, %16 : vector<8x128xf32>
    %18 = math.tanh %17 : vector<8x128xf32>
    %c0_13 = arith.constant 0 : index
    %c0_14 = arith.constant 0 : index
    %19 = vector.load %arg6[%c0_13, %c0_14] : memref<8x128xf32, #tpu.memory_space<vmem>>, vector<8x128xf32>
    tpu.vector_store %arg6[%c0_13, %c0_14], %18 {strides = array<i32>} : memref<8x128xf32, #tpu.memory_space<vmem>>, vector<8x128xf32>,
    return
  }
  func.func @transform_0(%arg0: i32) -> (i32, i32) {
    %c0_i32 = arith.constant 0 : i32
    %c0_i32_0 = arith.constant 0 : i32
    return %arg0, %c0_i32 : i32, i32
  }
  func.func @transform_1(%arg0: i32) -> (i32, i32) {
    %c0_i32 = arith.constant 0 : i32
    %c0_i32_0 = arith.constant 0 : i32
    %c0_i32_1 = arith.constant 0 : i32
    return %c0_i32, %c0_i32_0 : i32, i32
  }
  func.func @transform_2(%arg0: i32) -> (i32, i32) {
    %c0_i32 = arith.constant 0 : i32
    %c0_i32_0 = arith.constant 0 : i32
    %c0_i32_1 = arith.constant 0 : i32
    return %c0_i32, %c0_i32_0 : i32, i32
  }
  func.func @transform_3(%arg0: i32) -> (i32, i32) {
    %c0_i32 = arith.constant 0 : i32
    %c0_i32_0 = arith.constant 0 : i32
    %c0_i32_1 = arith.constant 0 : i32
    return %c0_i32, %c0_i32_0 : i32, i32
  }
  func.func @transform_4(%arg0: i32) -> (i32, i32) {
    %c0_i32 = arith.constant 0 : i32
    %c0_i32_0 = arith.constant 0 : i32
    %c0_i32_1 = arith.constant 0 : i32
    return %c0_i32, %c0_i32_0 : i32, i32
  }
  func.func @transform_5(%arg0: i32) -> (i32, i32) {
    %c0_i32 = arith.constant 0 : i32
    %c0_i32_0 = arith.constant 0 : i32
    return %arg0, %c0_i32 : i32, i32
  }
}

</mosaic_0001>

<llo_original>
// kernel: _forward_impl.1
$region0: #{_forward_impl.1}
  #allocation0 [shape = 'u32[]', space=smem, size = 0x4, offset = 0x4, fixed_abs, tag = 'smem constant byte address 0x4 - core index']
  #allocation1 [shape = 'u32[144,128]{1,0:T(1,128)}', space=vmem, size = 0x12000, scoped, tag = 'internal scratch']
  %s0 = inlined_call_operand.vmem [shape: f32[8,128], index: 0, kind: input, shape index: {}]
  %s1 = inlined_call_operand.vmem [shape: f32[3,128], index: 1, kind: input, shape index: {}]
  %s2 = inlined_call_operand.hbm [shape: f32[128,128], index: 2, kind: input, shape index: {}]
  %s3 = inlined_call_operand.hbm [shape: f32[128,128], index: 3, kind: input, shape index: {}]
  %s4 = inlined_call_operand.hbm [shape: f32[128,128], index: 4, kind: input, shape index: {}]
  %s5 = inlined_call_operand.hbm [shape: f32[8,128], index: 5, kind: output, shape index: {}]
  %s6 = sld [smem:[#allocation0]]
  $region42: #{_forward_impl.1} parent=0
    _
  %s8 = ssub.s32 1, %s6
  %s9 = scalar_select 0, %s8, %s6
  $region1: #{_forward_impl.1} parent=0
    #allocation2 [shape = 'u8[65536]{0}', space=vmem, size = 0x10000, scoped, tag = 'input window, operand 2, single buffered']
    #allocation3 [shape = 's32[1]{0}', space=sflag, size = 0x4, scoped, tag = 'scoped memory for _forward_impl.1']
    #allocation4 [shape = 's32[1]{0}', space=sflag, size = 0x4, scoped, tag = 'scoped memory for _forward_impl.1']
    #allocation5 [shape = 'u8[65536]{0}', space=vmem, size = 0x10000, scoped, tag = 'input window, operand 3, single buffered']
    #allocation6 [shape = 's32[1]{0}', space=sflag, size = 0x4, scoped, tag = 'scoped memory for _forward_impl.1']
    #allocation7 [shape = 'u8[65536]{0}', space=vmem, size = 0x10000, scoped, tag = 'input window, operand 4, single buffered']
    #allocation8 [shape = 'u8[4096]{0}', space=vmem, size = 0x1000, scoped, tag = 'output window, operand 0, single buffered']
    %10 = vsyncpa [#allocation3], 0
    %11 = vsyncpa [#allocation6], 0
    %12 = vsyncpa [#allocation4], 0
    // Predicated region
    $region2: #{_forward_impl.1} parent=1 // pred_check
      _
    $region3: #{_forward_impl.1} parent=1 // pred_check_branch
      %14 = sbr.rel (0) target = $region5
    $region4: #{_forward_impl.1} parent=1 // pred_region
      _
    $region5: #{_forward_impl.1} parent=1 // pred_fallthru
      _
    // Predicated region
    $region6: #{_forward_impl.1} parent=1 // pred_check
      _
    $region7: #{_forward_impl.1} parent=1 // pred_check_branch
      %16 = sbr.rel (0) target = $region9
    $region8: #{_forward_impl.1} parent=1 // pred_region
      _
    $region9: #{_forward_impl.1} parent=1 // pred_fallthru
      _
    // Predicated region
    $region10: #{_forward_impl.1} parent=1 // pred_check
      _
    $region11: #{_forward_impl.1} parent=1 // pred_check_branch
      %18 = sbr.rel (0) target = $region13
    $region12: #{_forward_impl.1} parent=1 // pred_region
      %s20 = ssub.s32 2048, 2048
      %21 = vsyncadd [#allocation3], %s20
      %s22 = sshll.u32 [#allocation2], 4
      %s23 = int_to_ptr.vmem [resolvable:$true] %s22
      %28 = dma.hbm_to_vmem [thread:$0]  %s2, 2048, %s23, [#allocation3], 128, 128, 8
    $region13: #{_forward_impl.1} parent=1 // pred_fallthru
      _
    // Predicated region
    $region14: #{_forward_impl.1} parent=1 // pred_check
      _
    $region15: #{_forward_impl.1} parent=1 // pred_check_branch
      %30 = sbr.rel (0) target = $region17
    $region16: #{_forward_impl.1} parent=1 // pred_region
      %s32 = ssub.s32 2048, 2048
      %33 = vsyncadd [#allocation6], %s32
      %s34 = sshll.u32 [#allocation5], 4
      %s35 = int_to_ptr.vmem [resolvable:$true] %s34
      %40 = dma.hbm_to_vmem [thread:$0]  %s3, 2048, %s35, [#allocation6], 128, 128, 8
    $region17: #{_forward_impl.1} parent=1 // pred_fallthru
      _
    // Predicated region
    $region18: #{_forward_impl.1} parent=1 // pred_check
      _
    $region19: #{_forward_impl.1} parent=1 // pred_check_branch
      %42 = sbr.rel (0) target = $region21
    $region20: #{_forward_impl.1} parent=1 // pred_region
      %s44 = ssub.s32 2048, 2048
      %45 = vsyncadd [#allocation6], %s44
      %s46 = sshll.u32 [#allocation7], 4
      %s47 = int_to_ptr.vmem [resolvable:$true] %s46
      %52 = dma.hbm_to_vmem [thread:$0]  %s4, 2048, %s47, [#allocation6], 128, 128, 8
    $region21: #{_forward_impl.1} parent=1 // pred_fallthru
      _
    // Predicated region
    $region22: #{_forward_impl.1} parent=1 // pred_check
      _
    $region23: #{_forward_impl.1} parent=1 // pred_check_branch
      %54 = sbr.rel (0) target = $region25
    $region24: #{_forward_impl.1} parent=1 // pred_region
      %55 = dma.done [#allocation3], 2048
    $region25: #{_forward_impl.1} parent=1 // pred_fallthru
      _
    // Predicated region
    $region26: #{_forward_impl.1} parent=1 // pred_check
      _
    $region27: #{_forward_impl.1} parent=1 // pred_check_branch
      %57 = sbr.rel (0) target = $region29
    $region28: #{_forward_impl.1} parent=1 // pred_region
      %58 = dma.done [#allocation6], 2048
    $region29: #{_forward_impl.1} parent=1 // pred_fallthru
      _
    // Predicated region
    $region30: #{_forward_impl.1} parent=1 // pred_check
      _
    $region31: #{_forward_impl.1} parent=1 // pred_check_branch
      %60 = sbr.rel (0) target = $region33
    $region32: #{_forward_impl.1} parent=1 // pred_region
      %61 = dma.done [#allocation6], 2048
    $region33: #{_forward_impl.1} parent=1 // pred_fallthru
      _
    %v62 = vld [vmem:[%s0] sm:$0xff]
    %v63 = vld [vmem:[#allocation2] sm:$0xff]
    %v64 = vld [vmem:[#allocation2 + $0x8] sm:$0xff]
    %v65 = vld [vmem:[#allocation2 + $0x10] sm:$0xff]
    %v66 = vld [vmem:[#allocation2 + $0x18] sm:$0xff]
    %v67 = vld [vmem:[#allocation2 + $0x20] sm:$0xff]
    %v68 = vld [vmem:[#allocation2 + $0x28] sm:$0xff]
    %v69 = vld [vmem:[#allocation2 + $0x30] sm:$0xff]
    %v70 = vld [vmem:[#allocation2 + $0x38] sm:$0xff]
    %v71 = vld [vmem:[#allocation2 + $0x40] sm:$0xff]
    %v72 = vld [vmem:[#allocation2 + $0x48] sm:$0xff]
    %v73 = vld [vmem:[#allocation2 + $0x50] sm:$0xff]
    %v74 = vld [vmem:[#allocation2 + $0x58] sm:$0xff]
    %v75 = vld [vmem:[#allocation2 + $0x60] sm:$0xff]
    %v76 = vld [vmem:[#allocation2 + $0x68] sm:$0xff]
    %v77 = vld [vmem:[#allocation2 + $0x70] sm:$0xff]
    %v78 = vld [vmem:[#allocation2 + $0x78] sm:$0xff]
    %v79 = vld [vmem:[%s1] sm:$0x1]
    %v80 = vlaneseq
    %v81 = vshrl.u32 %v80, 7
    %v82 = vsub.s32 0, %v81
    %v83 = vrot.slane %v79, %v82
    %84 = vmatprep.subr.mxu0 0.0
    %85 = vmatpush1.msra.mxu0 %v78
    %86 = vmatprep.subr.mxu0 0.0
    %87 = vmatpush1.msra.mxu0 %v77
    %88 = vmatprep.subr.mxu0 0.0
    %89 = vmatpush1.msra.mxu0 %v76
    %90 = vmatprep.subr.mxu0 0.0
    %91 = vmatpush1.msra.mxu0 %v75
    %92 = vmatprep.subr.mxu0 0.0
    %93 = vmatpush1.msra.mxu0 %v74
    %94 = vmatprep.subr.mxu0 0.0
    %95 = vmatpush1.msra.mxu0 %v73
    %96 = vmatprep.subr.mxu0 0.0
    %97 = vmatpush1.msra.mxu0 %v72
    %98 = vmatprep.subr.mxu0 0.0
    %99 = vmatpush1.msra.mxu0 %v71
    %100 = vmatprep.subr.mxu0 0.0
    %101 = vmatpush1.msra.mxu0 %v70
    %102 = vmatprep.subr.mxu0 0.0
    %103 = vmatpush1.msra.mxu0 %v69
    %104 = vmatprep.subr.mxu0 0.0
    %105 = vmatpush1.msra.mxu0 %v68
    %106 = vmatprep.subr.mxu0 0.0
    %107 = vmatpush1.msra.mxu0 %v67
    %108 = vmatprep.subr.mxu0 0.0
    %109 = vmatpush1.msra.mxu0 %v66
    %110 = vmatprep.subr.mxu0 0.0
    %111 = vmatpush1.msra.mxu0 %v65
    %112 = vmatprep.subr.mxu0 0.0
    %113 = vmatpush1.msra.mxu0 %v64
    %114 = vmatprep.subr.mxu0 0.0
    %115 = vmatpush1.msra.mxu0 %v63
    %116 = vmatprep.subr.mxu0 0.0
    %117 = vmatpush2.msra.mxu0 0.0
    %118 = vmatprep.subr.mxu0 0.0
    %119 = vmatpush2.msra.mxu0 0.0
    %120 = vmatprep.subr.mxu0 0.0
    %121 = vmatpush2.msra.mxu0 0.0
    %122 = vmatprep.subr.mxu0 0.0
    %123 = vmatpush2.msra.mxu0 0.0
    %124 = vmatprep.subr.mxu0 0.0
    %125 = vmatpush2.msra.mxu0 0.0
    %126 = vmatprep.subr.mxu0 0.0
    %127 = vmatpush2.msra.mxu0 0.0
    %128 = vmatprep.subr.mxu0 0.0
    %129 = vmatpush2.msra.mxu0 0.0
    %130 = vmatprep.subr.mxu0 0.0
    %131 = vmatpush2.msra.mxu0 0.0
    %132 = vmatprep.subr.mxu0 0.0
    %133 = vmatpush2.msra.mxu0 0.0
    %134 = vmatprep.subr.mxu0 0.0
    %135 = vmatpush2.msra.mxu0 0.0
    %136 = vmatprep.subr.mxu0 0.0
    %137 = vmatpush2.msra.mxu0 0.0
    %138 = vmatprep.subr.mxu0 0.0
    %139 = vmatpush2.msra.mxu0 0.0
    %140 = vmatprep.subr.mxu0 0.0
    %141 = vmatpush2.msra.mxu0 0.0
    %142 = vmatprep.subr.mxu0 0.0
    %143 = vmatpush2.msra.mxu0 0.0
    %144 = vmatprep.subr.mxu0 0.0
    %145 = vmatpush2.msra.mxu0 0.0
    %146 = vmatprep.subr.mxu0 0.0
    %147 = vmatpush2.msra.mxu0 0.0
    %148 = vmatprep.mubr.f32.mxu0 0.0
    %149 = vmatmul.mubr.f32.gmra.mxu0 %v62
    %v150 = vpop.f32.mrf.mxu0
    %v151 = vadd.f32 %v83, %v150
    %v152 = vpop.f32.mrf.mxu0
    %153 = vdwg.mxu0
    %v154 = vtanh.pop %v151
    %v155 = vld [vmem:[#allocation5] sm:$0xff]
    %v156 = vld [vmem:[#allocation5 + $0x8] sm:$0xff]
    %v157 = vld [vmem:[#allocation5 + $0x10] sm:$0xff]
    %v158 = vld [vmem:[#allocation5 + $0x18] sm:$0xff]
    %v159 = vld [vmem:[#allocation5 + $0x20] sm:$0xff]
    %v160 = vld [vmem:[#allocation5 + $0x28] sm:$0xff]
    %v161 = vld [vmem:[#allocation5 + $0x30] sm:$0xff]
    %v162 = vld [vmem:[#allocation5 + $0x38] sm:$0xff]
    %v163 = vld [vmem:[#allocation5 + $0x40] sm:$0xff]
    %v164 = vld [vmem:[#allocation5 + $0x48] sm:$0xff]
    %v165 = vld [vmem:[#allocation5 + $0x50] sm:$0xff]
    %v166 = vld [vmem:[#allocation5 + $0x58] sm:$0xff]
    %v167 = vld [vmem:[#allocation5 + $0x60] sm:$0xff]
    %v168 = vld [vmem:[#allocation5 + $0x68] sm:$0xff]
    %v169 = vld [vmem:[#allocation5 + $0x70] sm:$0xff]
    %v170 = vld [vmem:[#allocation5 + $0x78] sm:$0xff]
    %v171 = vld [vmem:[%s1 + $0x1] sm:$0x1]
    %v172 = vlaneseq
    %v173 = vshrl.u32 %v172, 7
    %v174 = vsub.s32 0, %v173
    %v175 = vrot.slane %v171, %v174
    %176 = vmatprep.subr.mxu0 0.0
    %177 = vmatpush1.msra.mxu0 %v170
    %178 = vmatprep.subr.mxu0 0.0
    %179 = vmatpush1.msra.mxu0 %v169
    %180 = vmatprep.subr.mxu0 0.0
    %181 = vmatpush1.msra.mxu0 %v168
    %182 = vmatprep.subr.mxu0 0.0
    %183 = vmatpush1.msra.mxu0 %v167
    %184 = vmatprep.subr.mxu0 0.0
    %185 = vmatpush1.msra.mxu0 %v166
    %186 = vmatprep.subr.mxu0 0.0
    %187 = vmatpush1.msra.mxu0 %v165
    %188 = vmatprep.subr.mxu0 0.0
    %189 = vmatpush1.msra.mxu0 %v164
    %190 = vmatprep.subr.mxu0 0.0
    %191 = vmatpush1.msra.mxu0 %v163
    %192 = vmatprep.subr.mxu0 0.0
    %193 = vmatpush1.msra.mxu0 %v162
    %194 = vmatprep.subr.mxu0 0.0
    %195 = vmatpush1.msra.mxu0 %v161
    %196 = vmatprep.subr.mxu0 0.0
    %197 = vmatpush1.msra.mxu0 %v160
    %198 = vmatprep.subr.mxu0 0.0
    %199 = vmatpush1.msra.mxu0 %v159
    %200 = vmatprep.subr.mxu0 0.0
    %201 = vmatpush1.msra.mxu0 %v158
    %202 = vmatprep.subr.mxu0 0.0
    %203 = vmatpush1.msra.mxu0 %v157
    %204 = vmatprep.subr.mxu0 0.0
    %205 = vmatpush1.msra.mxu0 %v156
    %206 = vmatprep.subr.mxu0 0.0
    %207 = vmatpush1.msra.mxu0 %v155
    %208 = vmatprep.subr.mxu0 0.0
    %209 = vmatpush2.msra.mxu0 0.0
    %210 = vmatprep.subr.mxu0 0.0
    %211 = vmatpush2.msra.mxu0 0.0
    %212 = vmatprep.subr.mxu0 0.0
    %213 = vmatpush2.msra.mxu0 0.0
    %214 = vmatprep.subr.mxu0 0.0
    %215 = vmatpush2.msra.mxu0 0.0
    %216 = vmatprep.subr.mxu0 0.0
    %217 = vmatpush2.msra.mxu0 0.0
    %218 = vmatprep.subr.mxu0 0.0
    %219 = vmatpush2.msra.mxu0 0.0
    %220 = vmatprep.subr.mxu0 0.0
    %221 = vmatpush2.msra.mxu0 0.0
    %222 = vmatprep.subr.mxu0 0.0
    %223 = vmatpush2.msra.mxu0 0.0
    %224 = vmatprep.subr.mxu0 0.0
    %225 = vmatpush2.msra.mxu0 0.0
    %226 = vmatprep.subr.mxu0 0.0
    %227 = vmatpush2.msra.mxu0 0.0
    %228 = vmatprep.subr.mxu0 0.0
    %229 = vmatpush2.msra.mxu0 0.0
    %230 = vmatprep.subr.mxu0 0.0
    %231 = vmatpush2.msra.mxu0 0.0
    %232 = vmatprep.subr.mxu0 0.0
    %233 = vmatpush2.msra.mxu0 0.0
    %234 = vmatprep.subr.mxu0 0.0
    %235 = vmatpush2.msra.mxu0 0.0
    %236 = vmatprep.subr.mxu0 0.0
    %237 = vmatpush2.msra.mxu0 0.0
    %238 = vmatprep.subr.mxu0 0.0
    %239 = vmatpush2.msra.mxu0 0.0
    %240 = vmatprep.mubr.f32.mxu0 0.0
    %241 = vmatmul.mubr.f32.gmra.mxu0 %v154
    %v242 = vpop.f32.mrf.mxu0
    %v243 = vadd.f32 %v175, %v242
    %v244 = vpop.f32.mrf.mxu0
    %245 = vdwg.mxu0
    %v246 = vtanh.pop %v243
    %v247 = vld [vmem:[#allocation7] sm:$0xff]
    %v248 = vld [vmem:[#allocation7 + $0x8] sm:$0xff]
    %v249 = vld [vmem:[#allocation7 + $0x10] sm:$0xff]
    %v250 = vld [vmem:[#allocation7 + $0x18] sm:$0xff]
    %v251 = vld [vmem:[#allocation7 + $0x20] sm:$0xff]
    %v252 = vld [vmem:[#allocation7 + $0x28] sm:$0xff]
    %v253 = vld [vmem:[#allocation7 + $0x30] sm:$0xff]
    %v254 = vld [vmem:[#allocation7 + $0x38] sm:$0xff]
    %v255 = vld [vmem:[#allocation7 + $0x40] sm:$0xff]
    %v256 = vld [vmem:[#allocation7 + $0x48] sm:$0xff]
    %v257 = vld [vmem:[#allocation7 + $0x50] sm:$0xff]
    %v258 = vld [vmem:[#allocation7 + $0x58] sm:$0xff]
    %v259 = vld [vmem:[#allocation7 + $0x60] sm:$0xff]
    %v260 = vld [vmem:[#allocation7 + $0x68] sm:$0xff]
    %v261 = vld [vmem:[#allocation7 + $0x70] sm:$0xff]
    %v262 = vld [vmem:[#allocation7 + $0x78] sm:$0xff]
    %v263 = vld [vmem:[%s1 + $0x2] sm:$0x1]
    %v264 = vlaneseq
    %v265 = vshrl.u32 %v264, 7
    %v266 = vsub.s32 0, %v265
    %v267 = vrot.slane %v263, %v266
    %268 = vmatprep.subr.mxu0 0.0
    %269 = vmatpush1.msra.mxu0 %v262
    %270 = vmatprep.subr.mxu0 0.0
    %271 = vmatpush1.msra.mxu0 %v261
    %272 = vmatprep.subr.mxu0 0.0
    %273 = vmatpush1.msra.mxu0 %v260
    %274 = vmatprep.subr.mxu0 0.0
    %275 = vmatpush1.msra.mxu0 %v259
    %276 = vmatprep.subr.mxu0 0.0
    %277 = vmatpush1.msra.mxu0 %v258
    %278 = vmatprep.subr.mxu0 0.0
    %279 = vmatpush1.msra.mxu0 %v257
    %280 = vmatprep.subr.mxu0 0.0
    %281 = vmatpush1.msra.mxu0 %v256
    %282 = vmatprep.subr.mxu0 0.0
    %283 = vmatpush1.msra.mxu0 %v255
    %284 = vmatprep.subr.mxu0 0.0
    %285 = vmatpush1.msra.mxu0 %v254
    %286 = vmatprep.subr.mxu0 0.0
    %287 = vmatpush1.msra.mxu0 %v253
    %288 = vmatprep.subr.mxu0 0.0
    %289 = vmatpush1.msra.mxu0 %v252
    %290 = vmatprep.subr.mxu0 0.0
    %291 = vmatpush1.msra.mxu0 %v251
    %292 = vmatprep.subr.mxu0 0.0
    %293 = vmatpush1.msra.mxu0 %v250
    %294 = vmatprep.subr.mxu0 0.0
    %295 = vmatpush1.msra.mxu0 %v249
    %296 = vmatprep.subr.mxu0 0.0
    %297 = vmatpush1.msra.mxu0 %v248
    %298 = vmatprep.subr.mxu0 0.0
    %299 = vmatpush1.msra.mxu0 %v247
    %300 = vmatprep.subr.mxu0 0.0
    %301 = vmatpush2.msra.mxu0 0.0
    %302 = vmatprep.subr.mxu0 0.0
    %303 = vmatpush2.msra.mxu0 0.0
    %304 = vmatprep.subr.mxu0 0.0
    %305 = vmatpush2.msra.mxu0 0.0
    %306 = vmatprep.subr.mxu0 0.0
    %307 = vmatpush2.msra.mxu0 0.0
    %308 = vmatprep.subr.mxu0 0.0
    %309 = vmatpush2.msra.mxu0 0.0
    %310 = vmatprep.subr.mxu0 0.0
    %311 = vmatpush2.msra.mxu0 0.0
    %312 = vmatprep.subr.mxu0 0.0
    %313 = vmatpush2.msra.mxu0 0.0
    %314 = vmatprep.subr.mxu0 0.0
    %315 = vmatpush2.msra.mxu0 0.0
    %316 = vmatprep.subr.mxu0 0.0
    %317 = vmatpush2.msra.mxu0 0.0
    %318 = vmatprep.subr.mxu0 0.0
    %319 = vmatpush2.msra.mxu0 0.0
    %320 = vmatprep.subr.mxu0 0.0
    %321 = vmatpush2.msra.mxu0 0.0
    %322 = vmatprep.subr.mxu0 0.0
    %323 = vmatpush2.msra.mxu0 0.0
    %324 = vmatprep.subr.mxu0 0.0
    %325 = vmatpush2.msra.mxu0 0.0
    %326 = vmatprep.subr.mxu0 0.0
    %327 = vmatpush2.msra.mxu0 0.0
    %328 = vmatprep.subr.mxu0 0.0
    %329 = vmatpush2.msra.mxu0 0.0
    %330 = vmatprep.subr.mxu0 0.0
    %331 = vmatpush2.msra.mxu0 0.0
    %332 = vmatprep.mubr.f32.mxu0 0.0
    %333 = vmatmul.mubr.f32.gmra.mxu0 %v246
    %v334 = vpop.f32.mrf.mxu0
    %v335 = vadd.f32 %v267, %v334
    %v336 = vpop.f32.mrf.mxu0
    %337 = vdwg.mxu0
    %v338 = vtanh.pop %v335
    %339 = vst [vmem:[#allocation8] sm:$0xff] %v338
    // Predicated region
    $region34: #{_forward_impl.1} parent=1 // pred_check
      _
    $region35: #{_forward_impl.1} parent=1 // pred_check_branch
      %341 = sbr.rel (0) target = $region37
    $region36: #{_forward_impl.1} parent=1 // pred_region
      %s343 = ssub.s32 128, 128
      %344 = vsyncadd [#allocation4], %s343
      %s346 = sshll.u32 [#allocation8], 4
      %s347 = int_to_ptr.vmem [resolvable:$true] %s346
      %349 = dma.vmem_to_hbm [thread:$0]  %s347, 128, %s5, [#allocation4]
    $region37: #{_forward_impl.1} parent=1 // pred_fallthru
      _
    // Predicated region
    $region38: #{_forward_impl.1} parent=1 // pred_check
      _
    $region39: #{_forward_impl.1} parent=1 // pred_check_branch
      %351 = sbr.rel (0) target = $region41
    $region40: #{_forward_impl.1} parent=1 // pred_region
      %352 = dma.done [#allocation4], 128
    $region41: #{_forward_impl.1} parent=1 // pred_fallthru
      _
    %353 = vsyncpa [#allocation3], 1
    %354 = vsyncpa [#allocation6], 1
    %355 = vsyncpa [#allocation4], 1

</llo_original>
